<compile_context>
chip_gen: v7x
topology: tpu7x:2x2x1
jax: 0.10.0
libtpu: 0.0.40
codegen_flags: <defaults>
</compile_context>

<pallas_src>
import functools

import jax
import jax.numpy as jnp
from jax import lax
from jax.experimental import pallas as pl
from jax.experimental.pallas import tpu as pltpu


_DEFAULT_TILE_BYTES = 8 * 1024 * 1024        # one x tile (Pallas double-buffers it)
_VMEM_LIMIT_FLOOR = 32 * 1024 * 1024
_VMEM_LIMIT_CAP = 48 * 1024 * 1024           # headroom under v7x's 64 MiB physical VMEM
_SUBLANE = {1: 32, 2: 16, 4: 8, 8: 8}        # min sublane multiple by itemsize


def _round_up(n, m):
    return ((n + m - 1) // m) * m


def _mask_oob_l(x, l_step, tl, true_l):
    """Zero sequence positions past the true length (ragged last L tile only)."""
    pos = l_step * tl + lax.broadcasted_iota(jnp.int32, (tl, 1), 0)   # (tl, 1)
    return jnp.where(pos < true_l, x, jnp.zeros_like(x))


def _pool_default_kernel(x_ref, o_ref, cnt_ref, *, tl, true_l):
    """mask=None path: a sequence position is valid iff its row-sum is nonzero."""
    l = pl.program_id(1)
    nl = pl.num_programs(1)

    @pl.when(l == 0)
    def _init():
        o_ref[...] = jnp.zeros_like(o_ref)
        cnt_ref[...] = jnp.zeros_like(cnt_ref)

    def accumulate(x):
        # Running sum over L, accumulated in f32 directly in the resident output.
        o_ref[...] += jnp.sum(x, axis=1, dtype=jnp.float32)           # (tb, D)
        # Default mask: count rows whose embedding sum is nonzero.
        row_sums = jnp.sum(x, axis=-1, dtype=jnp.float32)             # (tb, tl)
        cnt_ref[...] += jnp.sum((row_sums != 0.0).astype(jnp.float32),
                                axis=-1, keepdims=True)               # (tb, 1)

    if true_l % tl != 0:                       # static: ragged last L tile exists
        @pl.when(l < nl - 1)
        def _full():
            accumulate(x_ref[...])

        @pl.when(l == nl - 1)
        def _ragged():
            accumulate(_mask_oob_l(x_ref[...], l, tl, true_l))
    else:
        accumulate(x_ref[...])

    @pl.when(l == nl - 1)
    def _finalize():
        # Exact divide, matching torch: denom = float(count) + 1e-12.
        o_ref[...] = o_ref[...] / (cnt_ref[...] + 1e-12)


def _pool_masked_kernel(x_ref, denom_ref, o_ref, *, tl, true_l):
    """Explicit-mask path: mask only affects the (precomputed) denominator."""
    l = pl.program_id(1)
    nl = pl.num_programs(1)

    @pl.when(l == 0)
    def _init():
        o_ref[...] = jnp.zeros_like(o_ref)

    def accumulate(x):
        o_ref[...] += jnp.sum(x, axis=1, dtype=jnp.float32)

    if true_l % tl != 0:
        @pl.when(l < nl - 1)
        def _full():
            accumulate(x_ref[...])

        @pl.when(l == nl - 1)
        def _ragged():
            accumulate(_mask_oob_l(x_ref[...], l, tl, true_l))
    else:
        accumulate(x_ref[...])

    @pl.when(l == nl - 1)
    def _finalize():
        o_ref[...] = o_ref[...] / denom_ref[...]           # (tb, D) / (tb, 1)


def _choose_tiles(B, L, D, itemsize, target_bytes):
    """Pick (tb, tl) for the (tb, tl, D) x block.

    Constraints:
      * tl is a multiple of the x dtype's sublane pack, or tl == L (full dim).
      * tb is a multiple of 8 (f32 output block sublane), or tb == B (full dim).
    No wrapper padding: ragged edge blocks are handled by bounded edge DMAs
    (batch axis) and in-kernel iota masking (sequence axis).
    """
    sub = _SUBLANE.get(itemsize, 8)
    target = max(int(target_bytes), 1)
    row_bytes = max(D * itemsize, 1)
    tb_min = B if B < 8 else 8
    slab = L * row_bytes                               # one batch element, full L

    if tb_min * slab <= target or L <= sub:
        tl = L                                         # full sequence per step
        tb = max(tb_min, target // max(slab, 1))
    else:
        # Long L / big D: tile the sequence (bigger tl -> bigger contiguous DMAs).
        # TODO(synk): D large enough that an (8, sublane, D) tile blows the VMEM
        # budget (D >~ 32k f32) would need a D-tiled variant with a 3rd grid axis.
        tb = tb_min
        tl = (target // (tb * row_bytes)) // sub * sub
        tl = min(max(tl, sub), L)

    if B >= 16:
        # Keep grid[0] >= 2 so the "parallel" batch axis can shard across v7x's
        # two TensorCores (this cap is always a multiple of 8 and < B for B>=16).
        tb = min(tb, _round_up((B + 1) // 2, 8))
    tb = min(tb, B)
    if tb < B:
        tb = max(8, (tb // 8) * 8)                     # output block needs tb % 8 == 0
    return int(tb), int(tl)


def _vmem_limit_bytes(tb, tl, d, itemsize, sub):
    """Scoped-VMEM request: 2x double-buffered x tiles + output block + slack."""
    x_tile = tb * _round_up(tl, sub) * _round_up(d, 128) * itemsize
    out_tile = _round_up(tb, 8) * _round_up(d, 128) * 4
    needed = 2 * x_tile + 2 * out_tile + (64 << 10)
    return int(min(_VMEM_LIMIT_CAP, max(_VMEM_LIMIT_FLOOR, needed + needed // 2)))


def masked_average_pooling(embedding_matrix, mask=None, *,
                           tile_bytes=_DEFAULT_TILE_BYTES):
    """JAX/Pallas equivalent of MaskedAveragePooling.forward.

    Args:
      embedding_matrix: (B, L, D) float array (f32 / bf16 / f16).
      mask: optional (B, L) array (bool or numeric); as in the PyTorch module it
        is used only for the denominator.
      tile_bytes: target bytes per x tile (controls pipelining / VMEM use).

    Returns:
      (B, D) float32 array.
    """
    # NOTE: for tiny inputs (<~ a few hundred KiB) plain XLA beats the ~0.35 us
    # per-grid-step Pallas overhead; in production gate on size before calling.
    x = embedding_matrix
    B, L, D = x.shape
    itemsize = x.dtype.itemsize
    sub = _SUBLANE.get(itemsize, 8)
    tb, tl = _choose_tiles(B, L, D, itemsize, tile_bytes)

    grid = (pl.cdiv(B, tb), pl.cdiv(L, tl))
    x_spec = pl.BlockSpec((tb, tl, D), lambda b, l: (b, l, 0))
    out_spec = pl.BlockSpec((tb, D), lambda b, l: (b, 0))      # resident across l
    out_shape = jax.ShapeDtypeStruct((B, D), jnp.float32)
    compiler_params = pltpu.CompilerParams(
        dimension_semantics=("parallel", "arbitrary"),
        vmem_limit_bytes=_vmem_limit_bytes(tb, tl, D, itemsize, sub))

    if mask is None:
        kernel = functools.partial(_pool_default_kernel, tl=tl, true_l=L)
        return pl.pallas_call(
            kernel,
            out_shape=out_shape,
            grid_spec=pltpu.PrefetchScalarGridSpec(
                num_scalar_prefetch=0, grid=grid,
                in_specs=[x_spec], out_specs=out_spec,
                scratch_shapes=[pltpu.VMEM((tb, 1), jnp.float32)]),  # running count
            compiler_params=compiler_params,
        )(x)

    # Explicit mask: reduce it to a (B, 1) denominator in the wrapper. This reads
    # only the (B, L) mask (~1/D of the kernel's HBM traffic) and keeps kernel
    # VMEM bounded for any L; it also removes any mask-imposed constraint on tb.
    denom = jnp.sum(mask.astype(jnp.float32), axis=-1, keepdims=True) + 1e-12
    denom_spec = pl.BlockSpec((tb, 1), lambda b, l: (b, 0))
    kernel = functools.partial(_pool_masked_kernel, tl=tl, true_l=L)
    return pl.pallas_call(
        kernel,
        out_shape=out_shape,
        grid_spec=pltpu.PrefetchScalarGridSpec(
            num_scalar_prefetch=0, grid=grid,
            in_specs=[x_spec, denom_spec], out_specs=out_spec),
        compiler_params=compiler_params,
    )(x, denom)


def _reference(embedding_matrix, mask=None):
    """Pure-JAX reference mirroring the PyTorch forward (f32 accumulation)."""
    x = embedding_matrix.astype(jnp.float32)
    sum_out = jnp.sum(x, axis=1)
    if mask is None:
        mask = jnp.sum(x, axis=-1) != 0
    denom = jnp.sum(mask.astype(jnp.float32), axis=-1, keepdims=True) + 1e-12
    return sum_out / denom


if __name__ == "__main__":
    keys = jax.random.split(jax.random.PRNGKey(0), 8)

    # --- Small shapes matching the module's convention: (batch, seq, hidden).
    B, L, D = 2, 8, 32
    x = jax.random.normal(keys[0], (B, L, D), dtype=jnp.float32)
    x = x.at[0, 5:, :].set(0.0)     # make the default-mask path non-trivial
    x = x.at[1, 3:, :].set(0.0)

    out_default = masked_average_pooling(x)
    jax.block_until_ready(out_default)
    assert jnp.allclose(out_default, _reference(x), atol=1e-5, rtol=1e-5)

    bool_mask = jax.random.uniform(keys[1], (B, L)) > 0.4
    out_masked = masked_average_pooling(x, bool_mask)
    jax.block_until_ready(out_masked)
    assert jnp.allclose(out_masked, _reference(x, bool_mask), atol=1e-5, rtol=1e-5)

    # --- Ragged batch tile: B=20 -> tb=16 (grid[0]=2), last batch block partial.
    B1, L1, D1 = 20, 32, 64
    x1 = jax.random.normal(keys[2], (B1, L1, D1), dtype=jnp.float32)
    x1 = x1 * (jax.random.uniform(keys[3], (B1, L1, 1)) > 0.3)
    out1 = masked_average_pooling(x1)
    jax.block_until_ready(out1)
    assert jnp.allclose(out1, _reference(x1), atol=1e-5, rtol=1e-5)

    # --- Larger shapes with a small tile budget to exercise L-tiling, the
    #     ragged last L tile (iota masking), and the accumulator path.
    B2, L2, D2 = 48, 250, 128
    x2 = jax.random.normal(keys[4], (B2, L2, D2), dtype=jnp.float32)
    x2 = x2 * (jax.random.uniform(keys[5], (B2, L2, 1)) > 0.3)   # zero whole rows
    out2 = masked_average_pooling(x2, tile_bytes=64 * 1024)
    jax.block_until_ready(out2)
    assert jnp.allclose(out2, _reference(x2), atol=1e-4, rtol=1e-4)

    f_mask = (jax.random.uniform(keys[6], (B2, L2)) > 0.5).astype(jnp.float32)
    out2m = masked_average_pooling(x2, f_mask, tile_bytes=64 * 1024)
    jax.block_until_ready(out2m)
    assert jnp.allclose(out2m, _reference(x2, f_mask), atol=1e-4, rtol=1e-4)

    # --- bf16 input stays bf16 through the DMA; accumulation is f32 in-kernel.
    x3 = jax.random.normal(keys[7], (4, 64, 512), dtype=jnp.bfloat16)
    out3 = masked_average_pooling(x3, tile_bytes=16 * 1024)   # forces L tiling (TL=16)
    jax.block_until_ready(out3)
    assert jnp.allclose(out3, _reference(x3), atol=1e-3, rtol=1e-3)

    print("KERNEL_OK")
</pallas_src>

<mosaic_0001>
module attributes {stable_mosaic.version = 11 : i64} {
  func.func @_pool_default_kernel(%arg0: i32, %arg1: i32, %arg2: memref<2x8x32xf32, #tpu.memory_space<vmem>>, %arg3: memref<2x32xf32, #tpu.memory_space<vmem>>, %arg4: memref<2x1xf32, #tpu.memory_space<vmem>>) attributes {dimension_semantics = [#tpu.dimension_semantics<parallel>, #tpu.dimension_semantics<arbitrary>], iteration_bounds = array<i64: 1, 1>, scalar_prefetch = 0 : i64, scratch_operands = 1 : i64, tpu.core_type = #tpu.core_type<tc>, window_params = [{transform_indices = @transform_0, window_bounds = array<i64: 2, 8, 32>}, {transform_indices = @transform_1, window_bounds = array<i64: 2, 32>}]} {
    %c0_i32 = arith.constant 0 : i32
    %0 = arith.cmpi eq, %arg1, %c0_i32 : i32
    %1 = arith.extui %0 : i1 to i32
    %c0_i32_0 = arith.constant 0 : i32
    %2 = arith.cmpi ne, %1, %c0_i32_0 : i32
    scf.if %2 {
      %cst_16 = arith.constant 0.000000e+00 : f32
      %21 = vector.broadcast %cst_16 : f32 to vector<2x32xf32>
      %c0_17 = arith.constant 0 : index
      %c0_18 = arith.constant 0 : index
      %22 = vector.load %arg3[%c0_17, %c0_18] : memref<2x32xf32, #tpu.memory_space<vmem>>, vector<2x32xf32>
      tpu.vector_store %arg3[%c0_17, %c0_18], %21 {strides = array<i32>} : memref<2x32xf32, #tpu.memory_space<vmem>>, vector<2x32xf32>,
      %cst_19 = arith.constant 0.000000e+00 : f32
      %23 = vector.broadcast %cst_19 : f32 to vector<2x1xf32>
      %c0_20 = arith.constant 0 : index
      %c0_21 = arith.constant 0 : index
      %24 = vector.load %arg4[%c0_20, %c0_21] : memref<2x1xf32, #tpu.memory_space<vmem>>, vector<2x1xf32>
      tpu.vector_store %arg4[%c0_20, %c0_21], %23 {strides = array<i32>} : memref<2x1xf32, #tpu.memory_space<vmem>>, vector<2x1xf32>,
    } else {
    }
    %c0 = arith.constant 0 : index
    %c0_1 = arith.constant 0 : index
    %c0_2 = arith.constant 0 : index
    %3 = vector.load %arg2[%c0, %c0_1, %c0_2] : memref<2x8x32xf32, #tpu.memory_space<vmem>>, vector<2x8x32xf32>
    %c0_3 = arith.constant 0 : index
    %c0_4 = arith.constant 0 : index
    %4 = vector.load %arg3[%c0_3, %c0_4] : memref<2x32xf32, #tpu.memory_space<vmem>>, vector<2x32xf32>
    %cst = arith.constant dense<0.000000e+00> : vector<2x32xf32>
    %5 = vector.multi_reduction <add>, %3, %cst [1] : vector<2x8x32xf32> to vector<2x32xf32>
    %6 = arith.addf %4, %5 : vector<2x32xf32>
    %c0_5 = arith.constant 0 : index
    %c0_6 = arith.constant 0 : index
    %7 = vector.load %arg3[%c0_5, %c0_6] : memref<2x32xf32, #tpu.memory_space<vmem>>, vector<2x32xf32>
    tpu.vector_store %arg3[%c0_5, %c0_6], %6 {strides = array<i32>} : memref<2x32xf32, #tpu.memory_space<vmem>>, vector<2x32xf32>,
    %cst_7 = arith.constant dense<0.000000e+00> : vector<2x8xf32>
    %8 = vector.multi_reduction <add>, %3, %cst_7 [2] : vector<2x8x32xf32> to vector<2x8xf32>
    %c0_8 = arith.constant 0 : index
    %c0_9 = arith.constant 0 : index
    %9 = vector.load %arg4[%c0_8, %c0_9] : memref<2x1xf32, #tpu.memory_space<vmem>>, vector<2x1xf32>
    %cst_10 = arith.constant 0.000000e+00 : f32
    %10 = vector.broadcast %cst_10 : f32 to vector<2x8xf32>
    %11 = arith.cmpf one, %8, %10 : vector<2x8xf32>
    %12 = arith.extui %11 : vector<2x8xi1> to vector<2x8xi32>
    %13 = arith.sitofp %12 : vector<2x8xi32> to vector<2x8xf32>
    %cst_11 = arith.constant dense<0.000000e+00> : vector<2xf32>
    %14 = vector.multi_reduction <add>, %13, %cst_11 [1] : vector<2x8xf32> to vector<2xf32>
    %15 = vector.shape_cast %14 : vector<2xf32> to vector<2x1xf32>
    %16 = arith.addf %9, %15 : vector<2x1xf32>
    %c0_12 = arith.constant 0 : index
    %c0_13 = arith.constant 0 : index
    %17 = vector.load %arg4[%c0_12, %c0_13] : memref<2x1xf32, #tpu.memory_space<vmem>>, vector<2x1xf32>
    tpu.vector_store %arg4[%c0_12, %c0_13], %16 {strides = array<i32>} : memref<2x1xf32, #tpu.memory_space<vmem>>, vector<2x1xf32>,
    %c0_i32_14 = arith.constant 0 : i32
    %18 = arith.cmpi eq, %arg1, %c0_i32_14 : i32
    %19 = arith.extui %18 : i1 to i32
    %c0_i32_15 = arith.constant 0 : i32
    %20 = arith.cmpi ne, %19, %c0_i32_15 : i32
    scf.if %20 {
      %c0_16 = arith.constant 0 : index
      %c0_17 = arith.constant 0 : index
      %21 = vector.load %arg3[%c0_16, %c0_17] : memref<2x32xf32, #tpu.memory_space<vmem>>, vector<2x32xf32>
      %c0_18 = arith.constant 0 : index
      %c0_19 = arith.constant 0 : index
      %22 = vector.load %arg4[%c0_18, %c0_19] : memref<2x1xf32, #tpu.memory_space<vmem>>, vector<2x1xf32>
      %cst_20 = arith.constant 9.99999996E-13 : f32
      %23 = vector.broadcast %cst_20 : f32 to vector<2x1xf32>
      %24 = arith.addf %22, %23 : vector<2x1xf32>
      %25 = vector.broadcast %24 : vector<2x1xf32> to vector<2x32xf32>
      %26 = arith.divf %21, %25 : vector<2x32xf32>
      %c0_21 = arith.constant 0 : index
      %c0_22 = arith.constant 0 : index
      %27 = vector.load %arg3[%c0_21, %c0_22] : memref<2x32xf32, #tpu.memory_space<vmem>>, vector<2x32xf32>
      tpu.vector_store %arg3[%c0_21, %c0_22], %26 {strides = array<i32>} : memref<2x32xf32, #tpu.memory_space<vmem>>, vector<2x32xf32>,
    } else {
    }
    return
  }
  func.func @transform_0(%arg0: i32, %arg1: i32) -> (i32, i32, i32) {
    %c0_i32 = arith.constant 0 : i32
    %c0_i32_0 = arith.constant 0 : i32
    return %arg0, %arg1, %c0_i32 : i32, i32, i32
  }
  func.func @transform_1(%arg0: i32, %arg1: i32) -> (i32, i32) {
    %c0_i32 = arith.constant 0 : i32
    %c0_i32_0 = arith.constant 0 : i32
    return %arg0, %c0_i32 : i32, i32
  }
}

</mosaic_0001>

<llo_original>
// kernel: tpu_custom_call.1
$region0: #{tpu_custom_call.1}
  #allocation0 [shape = 'u32[]', space=smem, size = 0x4, offset = 0x4, fixed_abs, tag = 'smem constant byte address 0x4 - core index']
  #allocation1 [shape = 'u32[144,128]{1,0:T(1,128)}', space=vmem, size = 0x12000, scoped, tag = 'internal scratch']
  #allocation2 [shape = 'f32[2,1]{1,0:T(2,128)}', space=vmem, size = 0x400, scoped, tag = 'scratch operand']
  %s0 = inlined_call_operand.hbm [shape: f32[2,8,32], index: 0, kind: input, shape index: {}]
  %s1 = inlined_call_operand.hbm [shape: f32[2,32], index: 1, kind: output, shape index: {}]
  %s2 = sld [smem:[#allocation0]]
  $region26: #{tpu_custom_call.1} parent=0
    _
  %s4 = ssub.s32 1, %s2
  %s5 = scalar_select 0, %s4, %s2
  $region1: #{tpu_custom_call.1} parent=0
    #allocation3 [shape = 'u8[8192]{0}', space=vmem, size = 0x2000, scoped, tag = 'input window, operand 0, single buffered']
    #allocation4 [shape = 's32[1]{0}', space=sflag, size = 0x4, scoped, tag = 'scoped memory for tpu_custom_call.1']
    #allocation5 [shape = 's32[1]{0}', space=sflag, size = 0x4, scoped, tag = 'scoped memory for tpu_custom_call.1']
    #allocation6 [shape = 'u8[1024]{0}', space=vmem, size = 0x400, scoped, tag = 'output window, operand 0, single buffered']
    %6 = vsyncpa [#allocation4], 0
    %7 = vsyncpa [#allocation5], 0
    // Predicated region
    $region2: #{tpu_custom_call.1} parent=1 // pred_check
      _
    $region3: #{tpu_custom_call.1} parent=1 // pred_check_branch
      %9 = sbr.rel (0) target = $region5
    $region4: #{tpu_custom_call.1} parent=1 // pred_region
      %s11 = ssub.s32 256, 256
      %12 = vsyncadd [#allocation4], %s11
      %s13 = sshll.u32 [#allocation3], 4
      %s14 = int_to_ptr.vmem [resolvable:$true] %s13
      %19 = dma.hbm_to_vmem [thread:$0]  %s0, 256, %s14, [#allocation4], 128, 128, 8
    $region5: #{tpu_custom_call.1} parent=1 // pred_fallthru
      _
    // Predicated region
    $region6: #{tpu_custom_call.1} parent=1 // pred_check
      _
    $region7: #{tpu_custom_call.1} parent=1 // pred_check_branch
      %21 = sbr.rel (0) target = $region9
    $region8: #{tpu_custom_call.1} parent=1 // pred_region
      %22 = dma.done [#allocation4], 256
    $region9: #{tpu_custom_call.1} parent=1 // pred_fallthru
      _
    %p23 = scmp.eq.s32.totalorder 0, 0
    // Predicated region
    $region10: #{tpu_custom_call.1} parent=1 // pred_check
      %p24 = pneg %p23
    $region11: #{tpu_custom_call.1} parent=1 // pred_check_branch
      %26 = sbr.rel (%p24) target = $region13
    $region12: #{tpu_custom_call.1} parent=1 // pred_region
      %vm27 = vcmask 254976
      %28 = vst.msk [vmem:[#allocation6] sm:$0x3] %vm27, 0.0
      %vm29 = vcmask 1024
      %30 = vst.msk [vmem:[#allocation2] sm:$0x3] %vm29, 0.0
    $region13: #{tpu_custom_call.1} parent=1 // pred_fallthru
      _
    %v31 = vld [vmem:[#allocation3] sm:$0xff]
    %v32 = vld [vmem:[#allocation3 + $0x8] sm:$0xff]
    %v33 = vld [vmem:[#allocation6] sm:$0x3]
    %vm34 = vcmask 261120
    %v35 = vsel %vm34, %v31, 0.0
    %v36 = vrot.slane %v35, 4
    %v37 = vadd.f32 %v35, %v36
    %v38 = vrot.slane %v37, 2
    %v39 = vadd.f32 %v37, %v38
    %v40 = vrot.slane %v39, 1
    %v41 = vadd.f32 %v39, %v40
    %v42 = vsel %vm34, %v32, 0.0
    %v43 = vrot.slane %v42, 4
    %v44 = vadd.f32 %v42, %v43
    %v45 = vrot.slane %v44, 2
    %v46 = vadd.f32 %v44, %v45
    %v47 = vrot.slane %v46, 1
    %v48 = vadd.f32 %v46, %v47
    %vm51 = vcmask 1041409
    %v52 = vsel %vm51, %v48, %v41
    %v54 = vadd.f32 %v33, %v52
    %vm55 = vcmask 254976
    %56 = vst.msk [vmem:[#allocation6] sm:$0x3] %vm55, %v54
    %57 = vadd.xlane.f32.xlu0 %v35
    %v58 = vpop.xlane.xlu0 %57
    %59 = vadd.xlane.f32.xlu0 %v42
    %v60 = vpop.xlane.xlu0 %59
    %v61 = vld [vmem:[#allocation2] sm:$0x3]
    %vm62 = vcmp.ne.f32.partialorder %v58, 0.0
    %vm63 = vcmp.ne.f32.partialorder %v60, 0.0
    %v64 = vsel %vm62, 1, 0
    %v65 = vsel %vm63, 1, 0
    %v66 = vcvt.s32.f32 %v64
    %v67 = vcvt.s32.f32 %v65
    %v70 = vlaneseq
    %v71 = vand.u32 %v70, 127
    %v72 = vlaneseq
    %v73 = vshrl.u32 %v72, 7
    %v74 = vsub.s32 %v71, %v73
    %v75 = vrot.slane %v66, %v74
    %v76 = vlaneseq
    %v77 = vshrl.u32 %v76, 7
    %v78 = vsub.s32 %v71, %v77
    %v79 = vrot.slane %v67, %v78
    %v80 = vsel %vm51, %v79, %v75
    %vm82 = vcmask 58368
    %v83 = vsel %vm82, %v80, 0.0
    %84 = vadd.xlane.f32.xlu0 %v83
    %v85 = vpop.xlane.xlu0 %84
    %v86 = vadd.f32 %v61, %v85
    %vm87 = vcmask 1024
    %88 = vst.msk [vmem:[#allocation2] sm:$0x3] %vm87, %v86
    // Predicated region
    $region14: #{tpu_custom_call.1} parent=1 // pred_check
      %p89 = pneg %p23
    $region15: #{tpu_custom_call.1} parent=1 // pred_check_branch
      %91 = sbr.rel (%p89) target = $region17
    $region16: #{tpu_custom_call.1} parent=1 // pred_region
      %v92 = vld [vmem:[#allocation6] sm:$0x3]
      %v93 = vld [vmem:[#allocation2] sm:$0x3]
      %v94 = vadd.f32 %v93, 1e-12
      %96 = vset.pattern.permute.xlu0 0
      %97 = vperm.xlu0 %96, %v94
      %v98 = vpop.permute.xlu0 %97
      %v100 = vrcp.pop %v98
      %v101 = vmul.f32 %v92, %v100
      %102 = vst.msk [vmem:[#allocation6] sm:$0x3] %vm55, %v101
    $region17: #{tpu_custom_call.1} parent=1 // pred_fallthru
      _
    // Predicated region
    $region18: #{tpu_custom_call.1} parent=1 // pred_check
      _
    $region19: #{tpu_custom_call.1} parent=1 // pred_check_branch
      %104 = sbr.rel (0) target = $region21
    $region20: #{tpu_custom_call.1} parent=1 // pred_region
      %s106 = ssub.s32 32, 32
      %107 = vsyncadd [#allocation5], %s106
      %s109 = sshll.u32 [#allocation6], 4
      %s110 = int_to_ptr.vmem [resolvable:$true] %s109
      %112 = dma.vmem_to_hbm [thread:$0]  %s110, 32, %s1, [#allocation5]
    $region21: #{tpu_custom_call.1} parent=1 // pred_fallthru
      _
    // Predicated region
    $region22: #{tpu_custom_call.1} parent=1 // pred_check
      _
    $region23: #{tpu_custom_call.1} parent=1 // pred_check_branch
      %114 = sbr.rel (0) target = $region25
    $region24: #{tpu_custom_call.1} parent=1 // pred_region
      %115 = dma.done [#allocation5], 32
    $region25: #{tpu_custom_call.1} parent=1 // pred_fallthru
      _
    %116 = vsyncpa [#allocation4], 1
    %117 = vsyncpa [#allocation5], 1

</llo_original>
